<compile_context>
chip_gen: v6e
topology: v6e:2x2x1
jax: 0.10.0
libtpu: 0.0.40
codegen_flags: <defaults>
</compile_context>

<pallas_src>
import jax
import jax.numpy as jnp
from jax.experimental import pallas as pl
from jax.experimental.pallas import tpu as pltpu

LANE = 128


def _round_up(x, m):
    return (x + m - 1) // m * m


def _cdiv(a, b):
    return (a + b - 1) // b


def _tpu_vmem_and_cores():
    """Generation-aware VMEM capacity and TC count, with safe fallbacks."""
    vmem_capacity = 64 * 1024 * 1024   # conservative default (v7x per-TC VMEM)
    num_cores = 2                      # assume multi-TC so the batch is always split
    try:
        info = pltpu.get_tpu_info()
        vmem_capacity = int(getattr(info, "vmem_capacity_bytes", vmem_capacity))
        num_cores = int(getattr(info, "num_cores", num_cores))
    except Exception:
        pass
    return vmem_capacity, num_cores


# ---------------------------------------------------------------------------
# Kernel
# ---------------------------------------------------------------------------
def _make_resblock_kernel(out_pad, skip_fused):
    """Build the batch-tile kernel. `out_pad`/`skip_fused` are static."""

    def kernel(x_ref, w1_ref, b1_ref, w2_ref, b2_ref, o_ref):
        x = x_ref[...]
        # First MXU pass: (fused skip +) linear1(norm1(x)); bf16 operands, f32 acc.
        y = jnp.dot(x.astype(jnp.bfloat16), w1_ref[...],
                    preferred_element_type=jnp.float32) + b1_ref[...]
        if skip_fused:
            xskip = y[:, :out_pad]            # skip columns (no bias), lane-aligned slice
            h = jnp.tanh(y[:, out_pad:])      # act1
        else:
            xskip = x.astype(jnp.float32)     # identity skip: exact f32 residual
            h = jnp.tanh(y)                   # act1
        # Second MXU pass: linear2(norm2(h)) (norm2 folded into w2/b2).
        h = jnp.dot(h.astype(jnp.bfloat16), w2_ref[...],
                    preferred_element_type=jnp.float32) + b2_ref[...]
        # Residual add + act2, lane-dense store.
        o_ref[...] = jnp.tanh(h + xskip).astype(o_ref.dtype)

    return kernel


# ---------------------------------------------------------------------------
# One-time parameter transform (fold Affine norms, fuse skip+linear1, lane-pad)
# ---------------------------------------------------------------------------
def pack_resblock_params(raw, in_size, out_size, *, weight_dtype=jnp.bfloat16):
    out_pad = _round_up(out_size, LANE)
    pad_c = out_pad - out_size

    def _scalar(v, name):
        v = jnp.asarray(v, jnp.float32)
        # Guard: this module's Affine is scalar (nn.Parameter(torch.ones(1))).
        # A per-channel Affine would need g[:, None] * W and b + a @ W instead.
        assert v.size == 1, f"{name}: only scalar Affine gain/bias supported by this fold"
        return v.reshape(())

    g1, a1 = _scalar(raw["g1"], "g1"), _scalar(raw["a1"], "a1")
    g2, a2 = _scalar(raw["g2"], "g2"), _scalar(raw["a2"], "a2")

    w1 = jnp.asarray(raw["w1"], jnp.float32)    # (in, out)
    b1 = jnp.asarray(raw["b1"], jnp.float32)    # (out,)
    w2 = jnp.asarray(raw["w2"], jnp.float32)    # (out, out)
    b2 = jnp.asarray(raw["b2"], jnp.float32)    # (out,)

    # Exact algebraic fold of the scalar Affine norms into the Linear layers:
    #   linear(g*x + a) == x @ (g*W) + (b + a * sum_rows(W))
    w1_eff = g1 * w1
    b1_eff = b1 + a1 * jnp.sum(w1, axis=0)
    w2_eff = g2 * w2
    b2_eff = b2 + a2 * jnp.sum(w2, axis=0)

    # Lane-pad feature dims to multiples of 128 (zero padding is exact).
    w1_p = jnp.pad(w1_eff, ((0, 0), (0, pad_c)))
    b1_p = jnp.pad(b1_eff, (0, pad_c))
    w2_p = jnp.pad(w2_eff, ((0, pad_c), (0, pad_c)))
    b2_p = jnp.pad(b2_eff, (0, pad_c))

    if in_size != out_size:
        # Real Linear skip (bias=False): fuse into a single MXU pass [Wskip | g1*W1].
        skip_fused = True
        wskip_p = jnp.pad(jnp.asarray(raw["wskip"], jnp.float32), ((0, 0), (0, pad_c)))
    elif in_size == out_pad:
        # Identity skip, already lane-aligned: no eye() matmul, add x directly in f32.
        skip_fused = False
        wskip_p = None
    else:
        # Identity skip but in_size is not lane-aligned: let a small eye() ride along in
        # the same MXU pass (2*out_pad stays small here, so it is effectively free).
        skip_fused = True
        wskip_p = jnp.pad(jnp.eye(in_size, dtype=jnp.float32), ((0, 0), (0, pad_c)))

    if skip_fused:
        w_cat = jnp.concatenate([wskip_p, w1_p], axis=1)                      # (in, 2*out_pad)
        b_cat = jnp.concatenate([jnp.zeros((out_pad,), jnp.float32), b1_p])   # (2*out_pad,)
    else:
        w_cat, b_cat = w1_p, b1_p                                             # (in, out_pad)

    return dict(
        w_cat=w_cat.astype(weight_dtype),           # bf16 MXU operand
        b_cat=b_cat[None, :].astype(jnp.float32),   # f32 (added to f32 accumulator)
        w2=w2_p.astype(weight_dtype),
        b2=b2_p[None, :].astype(jnp.float32),
        in_size=in_size, out_size=out_size, out_pad=out_pad, skip_fused=skip_fused)


# ---------------------------------------------------------------------------
# Wrapper
# ---------------------------------------------------------------------------
def _vmem_need_bytes(tile_b, in_size, out_pad, n_cat, weight_bufs):
    io = 4 * 2 * tile_b * (in_size + out_pad)                       # double-buffered x/out tiles
    wts = weight_bufs * (2 * (in_size * n_cat + out_pad * out_pad)  # bf16 weights
                         + 4 * (n_cat + out_pad))                   # f32 biases
    tmp = 4 * tile_b * (n_cat + 2 * out_pad)                        # y / h / xskip headroom
    return io + wts + tmp


def resblock_forward(x, packed, *, max_tile_b=1024, out_dtype=None):
    """x: (B, in_size) float array. packed: output of pack_resblock_params."""
    B, in_size = x.shape
    assert in_size == packed["in_size"]
    out_size, out_pad = packed["out_size"], packed["out_pad"]
    skip_fused = packed["skip_fused"]
    w_cat, b_cat, w2, b2 = packed["w_cat"], packed["b_cat"], packed["w2"], packed["b2"]
    n_cat = w_cat.shape[1]
    # TODO(synk): use bf16 output (and bf16 x input) to halve HBM/store bytes on v5e
    #             when the downstream layer tolerates it; kept f32 here for exactness.
    out_dtype = out_dtype or x.dtype

    vmem_capacity, num_cores = _tpu_vmem_and_cores()
    vmem_cap = int(vmem_capacity * 7 // 8)        # ~112 MiB on v5e/v6e, ~56 MiB on v7x

    # Batch tiling: whole batch when tiny, otherwise >=2 grid steps so the "parallel"
    # axis can shard across both TensorCores on v7x. tile_b kept a multiple of 8.
    B8 = _round_up(B, 8)
    min_steps = 2 if (num_cores >= 2 and B8 > 8) else 1
    steps = max(min_steps, _cdiv(B8, max_tile_b))
    tile_b = _round_up(_cdiv(B8, steps), 8)
    while tile_b > 8 and _vmem_need_bytes(tile_b, in_size, out_pad, n_cat, 2) > vmem_cap:
        tile_b = _round_up(tile_b // 2, 8)
    steps = _cdiv(B8, tile_b)
    B_pad = steps * tile_b

    # Hard guard: resident weights must fit even with a minimal batch tile.
    # TODO(synk): for out_pad large enough to trip this, add an "arbitrary" N-tiled
    #             grid axis over out_pad with a VMEM f32 accumulator.
    if _vmem_need_bytes(8, in_size, out_pad, n_cat, 1) > vmem_cap:
        raise ValueError(
            f"ResBlock weights (out_pad={out_pad}) exceed the {vmem_cap >> 20} MiB VMEM "
            "budget; an N-tiled accumulator path is required.")

    if B_pad != B:
        # At most tile_b-1 zero rows; padded rows are dropped by the final slice.
        x = jnp.pad(x, ((0, B_pad - B), (0, 0)))

    kernel = _make_resblock_kernel(out_pad, skip_fused)

    def _call(weight_pipeline_mode):
        def wspec(shape):
            if weight_pipeline_mode is None:
                return pl.BlockSpec(shape, lambda i: (0, 0))
            return pl.BlockSpec(shape, lambda i: (0, 0),
                                pipeline_mode=weight_pipeline_mode)

        return pl.pallas_call(
            kernel,
            out_shape=jax.ShapeDtypeStruct((B_pad, out_pad), out_dtype),
            grid=(steps,),
            in_specs=[
                pl.BlockSpec((tile_b, in_size), lambda i: (i, 0)),   # x batch tile
                wspec((in_size, n_cat)),                             # [Wskip | g1*W1] (bf16)
                wspec((1, n_cat)),                                   # [0 | b1 + a1*sum(W1)]
                wspec((out_pad, out_pad)),                           # g2*W2 (bf16)
                wspec((1, out_pad)),                                 # b2 + a2*sum(W2)
            ],
            out_specs=pl.BlockSpec((tile_b, out_pad), lambda i: (i, 0)),
            compiler_params=pltpu.CompilerParams(
                dimension_semantics=("parallel",),
                vmem_limit_bytes=vmem_cap),
        )(x, w_cat, b_cat, w2, b2)

    # Grid-invariant weights single-buffered; fall back to default double-buffering
    # if this jax build rejects pipeline_mode / Buffered(1).
    try:
        out = _call(pl.Buffered(1))
    except Exception:
        out = _call(None)

    return out[:B, :out_size]


# ---------------------------------------------------------------------------
# Reference (raw PyTorch math, un-fused, un-padded, f32) and synthetic init
# ---------------------------------------------------------------------------
def init_resblock_params(key, in_size, out_size, *,
                         gain1=1.0, bias1=0.0, gain2=1.0, bias2=-0.0):
    ks = jax.random.split(key, 5)
    p = dict(
        w1=jax.random.normal(ks[1], (in_size, out_size), jnp.float32) * 0.1,
        b1=jax.random.normal(ks[2], (out_size,), jnp.float32) * 0.1,
        w2=jax.random.normal(ks[3], (out_size, out_size), jnp.float32) * 0.1,
        b2=jax.random.normal(ks[4], (out_size,), jnp.float32) * 0.1,
        g1=jnp.float32(gain1), a1=jnp.float32(bias1),
        g2=jnp.float32(gain2), a2=jnp.float32(bias2),
    )
    if in_size != out_size:   # nn.Linear(in, out, bias=False) skip
        p["wskip"] = jax.random.normal(ks[0], (in_size, out_size), jnp.float32) * 0.1
    return p


def resblock_reference(x, p):
    xskip = x @ p["wskip"] if "wskip" in p else x
    h = jnp.tanh((p["g1"] * x + p["a1"]) @ p["w1"] + p["b1"])
    h = (p["g2"] * h + p["a2"]) @ p["w2"] + p["b2"]
    return jnp.tanh(h + xskip)


if __name__ == "__main__":
    key = jax.random.PRNGKey(0)
    k1, k2, k3, kp1, kp2, kp3 = jax.random.split(key, 6)
    # bf16 MXU operands (f32 accumulation) -> a few e-3 absolute error vs f32 reference.
    TOL = 3e-2

    # --- Test 1: in != out (Linear skip), default Affine init (g=1, b=0) ---
    B, in_size, out_size = 32, 16, 32
    x = jax.random.normal(k1, (B, in_size), jnp.float32)
    raw = init_resblock_params(kp1, in_size, out_size)
    packed = pack_resblock_params(raw, in_size, out_size)
    out = jax.block_until_ready(resblock_forward(x, packed))
    ref = resblock_reference(x, raw)
    assert out.shape == (B, out_size)
    err1 = float(jnp.max(jnp.abs(out - ref)))
    assert err1 < TOL, f"test1 max err {err1}"

    # --- Test 2: in == out (Identity skip, unaligned -> fused eye), non-trivial Affine,
    #             ragged batch ---
    B2, size2 = 20, 32
    x2 = jax.random.normal(k2, (B2, size2), jnp.float32)
    raw2 = init_resblock_params(kp2, size2, size2,
                                gain1=1.3, bias1=0.2, gain2=0.8, bias2=-0.1)
    packed2 = pack_resblock_params(raw2, size2, size2)
    out2 = jax.block_until_ready(resblock_forward(x2, packed2))
    ref2 = resblock_reference(x2, raw2)
    assert out2.shape == (B2, size2)
    err2 = float(jnp.max(jnp.abs(out2 - ref2)))
    assert err2 < TOL, f"test2 max err {err2}"

    # --- Test 3: in == out == 128 (Identity skip, lane-aligned -> direct f32 residual) ---
    B3, size3 = 24, 128
    x3 = jax.random.normal(k3, (B3, size3), jnp.float32)
    raw3 = init_resblock_params(kp3, size3, size3, gain1=0.9, bias1=-0.05)
    packed3 = pack_resblock_params(raw3, size3, size3)
    assert not packed3["skip_fused"]
    out3 = jax.block_until_ready(resblock_forward(x3, packed3))
    ref3 = resblock_reference(x3, raw3)
    assert out3.shape == (B3, size3)
    err3 = float(jnp.max(jnp.abs(out3 - ref3)))
    assert err3 < TOL, f"test3 max err {err3}"

    print("KERNEL_OK")
</pallas_src>

<mosaic_0001>
module attributes {stable_mosaic.version = 11 : i64} {
  func.func @kernel(%arg0: i32, %arg1: memref<16x16xf32, #tpu.memory_space<vmem>>, %arg2: memref<16x256xbf16, #tpu.memory_space<vmem>>, %arg3: memref<1x256xf32, #tpu.memory_space<vmem>>, %arg4: memref<128x128xbf16, #tpu.memory_space<vmem>>, %arg5: memref<1x128xf32, #tpu.memory_space<vmem>>, %arg6: memref<16x128xf32, #tpu.memory_space<vmem>>) attributes {dimension_semantics = [#tpu.dimension_semantics<parallel>], iteration_bounds = array<i64: 2>, scalar_prefetch = 0 : i64, scratch_operands = 0 : i64, tpu.core_type = #tpu.core_type<tc>, window_params = [{transform_indices = @transform_0, window_bounds = array<i64: 16, 16>}, {pipeline_mode = #tpu.pipeline_mode<synchronous>, transform_indices = @transform_1, window_bounds = array<i64: 16, 256>}, {pipeline_mode = #tpu.pipeline_mode<synchronous>, transform_indices = @transform_2, window_bounds = array<i64: 1, 256>}, {pipeline_mode = #tpu.pipeline_mode<synchronous>, transform_indices = @transform_3, window_bounds = array<i64: 128, 128>}, {pipeline_mode = #tpu.pipeline_mode<synchronous>, transform_indices = @transform_4, window_bounds = array<i64: 1, 128>}, {transform_indices = @transform_5, window_bounds = array<i64: 16, 128>}]} {
    %c0 = arith.constant 0 : index
    %c0_0 = arith.constant 0 : index
    %0 = vector.load %arg1[%c0, %c0_0] : memref<16x16xf32, #tpu.memory_space<vmem>>, vector<16x16xf32>
    %1 = arith.truncf %0 : vector<16x16xf32> to vector<16x16xbf16>
    %c0_1 = arith.constant 0 : index
    %c0_2 = arith.constant 0 : index
    %2 = vector.load %arg2[%c0_1, %c0_2] : memref<16x256xbf16, #tpu.memory_space<vmem>>, vector<16x256xbf16>
    %cst = arith.constant dense<0.000000e+00> : vector<16x256xf32>
    %3 = tpu.matmul %1, %2, %cst {dimension_numbers = #tpu.dot_dimension_numbers<[1], [0], [0], [1], [0, 0, 1, 1], [], []>} : vector<16x16xbf16>, vector<16x256xbf16>, vector<16x256xf32> -> vector<16x256xf32>
    %c0_3 = arith.constant 0 : index
    %c0_4 = arith.constant 0 : index
    %4 = vector.load %arg3[%c0_3, %c0_4] : memref<1x256xf32, #tpu.memory_space<vmem>>, vector<1x256xf32>
    %5 = vector.broadcast %4 : vector<1x256xf32> to vector<16x256xf32>
    %6 = arith.addf %3, %5 : vector<16x256xf32>
    %7 = vector.extract_strided_slice %6 {offsets = [0, 0], sizes = [16, 128], strides = [1, 1]} : vector<16x256xf32> to vector<16x128xf32>
    %8 = vector.extract_strided_slice %6 {offsets = [0, 128], sizes = [16, 128], strides = [1, 1]} : vector<16x256xf32> to vector<16x128xf32>
    %9 = math.tanh %8 : vector<16x128xf32>
    %10 = arith.truncf %9 : vector<16x128xf32> to vector<16x128xbf16>
    %c0_5 = arith.constant 0 : index
    %c0_6 = arith.constant 0 : index
    %11 = vector.load %arg4[%c0_5, %c0_6] : memref<128x128xbf16, #tpu.memory_space<vmem>>, vector<128x128xbf16>
    %cst_7 = arith.constant dense<0.000000e+00> : vector<16x128xf32>
    %12 = tpu.matmul %10, %11, %cst_7 {dimension_numbers = #tpu.dot_dimension_numbers<[1], [0], [0], [1], [0, 0, 1, 1], [], []>} : vector<16x128xbf16>, vector<128x128xbf16>, vector<16x128xf32> -> vector<16x128xf32>
    %c0_8 = arith.constant 0 : index
    %c0_9 = arith.constant 0 : index
    %13 = vector.load %arg5[%c0_8, %c0_9] : memref<1x128xf32, #tpu.memory_space<vmem>>, vector<1x128xf32>
    %14 = vector.broadcast %13 : vector<1x128xf32> to vector<16x128xf32>
    %15 = arith.addf %12, %14 : vector<16x128xf32>
    %16 = arith.addf %15, %7 : vector<16x128xf32>
    %17 = math.tanh %16 : vector<16x128xf32>
    %c0_10 = arith.constant 0 : index
    %c0_11 = arith.constant 0 : index
    %18 = vector.load %arg6[%c0_10, %c0_11] : memref<16x128xf32, #tpu.memory_space<vmem>>, vector<16x128xf32>
    tpu.vector_store %arg6[%c0_10, %c0_11], %17 {strides = array<i32>} : memref<16x128xf32, #tpu.memory_space<vmem>>, vector<16x128xf32>,
    return
  }
  func.func @transform_0(%arg0: i32) -> (i32, i32) {
    %c0_i32 = arith.constant 0 : i32
    %c0_i32_0 = arith.constant 0 : i32
    return %arg0, %c0_i32 : i32, i32
  }
  func.func @transform_1(%arg0: i32) -> (i32, i32) {
    %c0_i32 = arith.constant 0 : i32
    %c0_i32_0 = arith.constant 0 : i32
    %c0_i32_1 = arith.constant 0 : i32
    return %c0_i32, %c0_i32_0 : i32, i32
  }
  func.func @transform_2(%arg0: i32) -> (i32, i32) {
    %c0_i32 = arith.constant 0 : i32
    %c0_i32_0 = arith.constant 0 : i32
    %c0_i32_1 = arith.constant 0 : i32
    return %c0_i32, %c0_i32_0 : i32, i32
  }
  func.func @transform_3(%arg0: i32) -> (i32, i32) {
    %c0_i32 = arith.constant 0 : i32
    %c0_i32_0 = arith.constant 0 : i32
    %c0_i32_1 = arith.constant 0 : i32
    return %c0_i32, %c0_i32_0 : i32, i32
  }
  func.func @transform_4(%arg0: i32) -> (i32, i32) {
    %c0_i32 = arith.constant 0 : i32
    %c0_i32_0 = arith.constant 0 : i32
    %c0_i32_1 = arith.constant 0 : i32
    return %c0_i32, %c0_i32_0 : i32, i32
  }
  func.func @transform_5(%arg0: i32) -> (i32, i32) {
    %c0_i32 = arith.constant 0 : i32
    %c0_i32_0 = arith.constant 0 : i32
    return %arg0, %c0_i32 : i32, i32
  }
}

module attributes {stable_mosaic.version = 11 : i64} {
  func.func @kernel(%arg0: i32, %arg1: memref<16x16xf32, #tpu.memory_space<vmem>>, %arg2: memref<16x256xbf16, #tpu.memory_space<vmem>>, %arg3: memref<1x256xf32, #tpu.memory_space<vmem>>, %arg4: memref<128x128xbf16, #tpu.memory_space<vmem>>, %arg5: memref<1x128xf32, #tpu.memory_space<vmem>>, %arg6: memref<16x128xf32, #tpu.memory_space<vmem>>) attributes {dimension_semantics = [#tpu.dimension_semantics<parallel>], iteration_bounds = array<i64: 2>, scalar_prefetch = 0 : i64, scratch_operands = 0 : i64, tpu.core_type = #tpu.core_type<tc>, window_params = [{transform_indices = @transform_0, window_bounds = array<i64: 16, 16>}, {pipeline_mode = #tpu.pipeline_mode<synchronous>, transform_indices = @transform_1, window_bounds = array<i64: 16, 256>}, {pipeline_mode = #tpu.pipeline_mode<synchronous>, transform_indices = @transform_2, window_bounds = array<i64: 1, 256>}, {pipeline_mode = #tpu.pipeline_mode<synchronous>, transform_indices = @transform_3, window_bounds = array<i64: 128, 128>}, {pipeline_mode = #tpu.pipeline_mode<synchronous>, transform_indices = @transform_4, window_bounds = array<i64: 1, 128>}, {transform_indices = @transform_5, window_bounds = array<i64: 16, 128>}]} {
    %c0 = arith.constant 0 : index
    %c0_0 = arith.constant 0 : index
    %0 = vector.load %arg1[%c0, %c0_0] : memref<16x16xf32, #tpu.memory_space<vmem>>, vector<16x16xf32>
    %1 = arith.truncf %0 : vector<16x16xf32> to vector<16x16xbf16>
    %c0_1 = arith.constant 0 : index
    %c0_2 = arith.constant 0 : index
    %2 = vector.load %arg2[%c0_1, %c0_2] : memref<16x256xbf16, #tpu.memory_space<vmem>>, vector<16x256xbf16>
    %cst = arith.constant dense<0.000000e+00> : vector<16x256xf32>
    %3 = tpu.matmul %1, %2, %cst {dimension_numbers = #tpu.dot_dimension_numbers<[1], [0], [0], [1], [0, 0, 1, 1], [], []>} : vector<16x16xbf16>, vector<16x256xbf16>, vector<16x256xf32> -> vector<16x256xf32>
    %c0_3 = arith.constant 0 : index
    %c0_4 = arith.constant 0 : index
    %4 = vector.load %arg3[%c0_3, %c0_4] : memref<1x256xf32, #tpu.memory_space<vmem>>, vector<1x256xf32>
    %5 = vector.broadcast %4 : vector<1x256xf32> to vector<16x256xf32>
    %6 = arith.addf %3, %5 : vector<16x256xf32>
    %7 = vector.extract_strided_slice %6 {offsets = [0, 0], sizes = [16, 128], strides = [1, 1]} : vector<16x256xf32> to vector<16x128xf32>
    %8 = vector.extract_strided_slice %6 {offsets = [0, 128], sizes = [16, 128], strides = [1, 1]} : vector<16x256xf32> to vector<16x128xf32>
    %9 = math.tanh %8 : vector<16x128xf32>
    %10 = arith.truncf %9 : vector<16x128xf32> to vector<16x128xbf16>
    %c0_5 = arith.constant 0 : index
    %c0_6 = arith.constant 0 : index
    %11 = vector.load %arg4[%c0_5, %c0_6] : memref<128x128xbf16, #tpu.memory_space<vmem>>, vector<128x128xbf16>
    %cst_7 = arith.constant dense<0.000000e+00> : vector<16x128xf32>
    %12 = tpu.matmul %10, %11, %cst_7 {dimension_numbers = #tpu.dot_dimension_numbers<[1], [0], [0], [1], [0, 0, 1, 1], [], []>} : vector<16x128xbf16>, vector<128x128xbf16>, vector<16x128xf32> -> vector<16x128xf32>
    %c0_8 = arith.constant 0 : index
    %c0_9 = arith.constant 0 : index
    %13 = vector.load %arg5[%c0_8, %c0_9] : memref<1x128xf32, #tpu.memory_space<vmem>>, vector<1x128xf32>
    %14 = vector.broadcast %13 : vector<1x128xf32> to vector<16x128xf32>
    %15 = arith.addf %12, %14 : vector<16x128xf32>
    %16 = arith.addf %15, %7 : vector<16x128xf32>
    %17 = math.tanh %16 : vector<16x128xf32>
    %c0_10 = arith.constant 0 : index
    %c0_11 = arith.constant 0 : index
    %18 = vector.load %arg6[%c0_10, %c0_11] : memref<16x128xf32, #tpu.memory_space<vmem>>, vector<16x128xf32>
    tpu.vector_store %arg6[%c0_10, %c0_11], %17 {strides = array<i32>} : memref<16x128xf32, #tpu.memory_space<vmem>>, vector<16x128xf32>,
    return
  }
  func.func @transform_0(%arg0: i32) -> (i32, i32) {
    %c0_i32 = arith.constant 0 : i32
    %c0_i32_0 = arith.constant 0 : i32
    return %arg0, %c0_i32 : i32, i32
  }
  func.func @transform_1(%arg0: i32) -> (i32, i32) {
    %c0_i32 = arith.constant 0 : i32
    %c0_i32_0 = arith.constant 0 : i32
    %c0_i32_1 = arith.constant 0 : i32
    return %c0_i32, %c0_i32_0 : i32, i32
  }
  func.func @transform_2(%arg0: i32) -> (i32, i32) {
    %c0_i32 = arith.constant 0 : i32
    %c0_i32_0 = arith.constant 0 : i32
    %c0_i32_1 = arith.constant 0 : i32
    return %c0_i32, %c0_i32_0 : i32, i32
  }
  func.func @transform_3(%arg0: i32) -> (i32, i32) {
    %c0_i32 = arith.constant 0 : i32
    %c0_i32_0 = arith.constant 0 : i32
    %c0_i32_1 = arith.constant 0 : i32
    return %c0_i32, %c0_i32_0 : i32, i32
  }
  func.func @transform_4(%arg0: i32) -> (i32, i32) {
    %c0_i32 = arith.constant 0 : i32
    %c0_i32_0 = arith.constant 0 : i32
    %c0_i32_1 = arith.constant 0 : i32
    return %c0_i32, %c0_i32_0 : i32, i32
  }
  func.func @transform_5(%arg0: i32) -> (i32, i32) {
    %c0_i32 = arith.constant 0 : i32
    %c0_i32_0 = arith.constant 0 : i32
    return %arg0, %c0_i32 : i32, i32
  }
}

</mosaic_0001>

<llo_original>
// kernel: tpu_custom_call.1
$region0: #{tpu_custom_call.1}
  #allocation0 [shape = 'u32[]', space=smem, size = 0x4, offset = 0x4, fixed_abs, tag = 'smem constant byte address 0x4 - core index']
  #allocation1 [shape = 'u32[144,128]{1,0:T(1,128)}', space=vmem, size = 0x12000, scoped, tag = 'internal scratch']
  %s0 = inlined_call_operand.vmem [shape: f32[32,16], index: 0, kind: input, shape index: {}]
  %s1 = inlined_call_operand.vmem [shape: bf16[16,256], index: 1, kind: input, shape index: {}]
  %s2 = inlined_call_operand.vmem [shape: f32[1,256], index: 2, kind: input, shape index: {}]
  %s3 = inlined_call_operand.hbm [shape: bf16[128,128], index: 3, kind: input, shape index: {}]
  %s4 = inlined_call_operand.vmem [shape: f32[1,128], index: 4, kind: input, shape index: {}]
  %s5 = inlined_call_operand.hbm [shape: f32[32,128], index: 5, kind: output, shape index: {}]
  %s6 = sld [smem:[#allocation0]]
  $region57: #{tpu_custom_call.1} parent=0
    _
  %s8 = ssub.s32 1, %s6
  %s9 = scalar_select 0, %s8, %s6
  $region1: #{tpu_custom_call.1} parent=0
    #allocation2 [shape = 'u8[32768]{0}', space=vmem, size = 0x8000, scoped, tag = 'input window, operand 3, single buffered']
    #allocation3 [shape = 's32[2]{0}', space=sflag, size = 0x8, scoped, tag = 'scoped memory for tpu_custom_call.1']
    #allocation4 [shape = 's32[2]{0}', space=sflag, size = 0x8, scoped, tag = 'scoped memory for tpu_custom_call.1']
    #allocation5 [shape = 'u8[16384]{0}', space=vmem, size = 0x4000, scoped, tag = 'output window, operand 0']
    %10 = vsyncpa [#allocation3], 0
    %11 = vsyncpa [#allocation4], 0
    %s12 = scalar_lea.sflag [#allocation4], 1
    %13 = vsyncpa %s12, 0
    loop: start=0, step=1, limit=4
    $region2: #{tpu_custom_call.1} parent=1 // loop_pre_header
      _
    $region3: #{tpu_custom_call.1} parent=1 // loop_header
      %s15 = sphi 0, %s19
      %p16 = scmp.ge.s32.totalorder %s15, 4
      %s25 = sphi 0, %s27
      %s28 = sphi 0, %s25
      %s29 = sphi 0, %s28
      %s45 = sphi 0, %s29
      %s49 = sphi 0, %s49
      %s51 = sphi 0, %s49
      %s52 = sphi 0, %s51
      %s66 = sphi 0, %s52
      %s70 = sphi 0, %s70
      %s72 = sphi 0, %s70
      %s73 = sphi 0, %s72
      %s87 = sphi 0, %s73
      %s91 = sphi 0, %s91
      %s93 = sphi 0, %s91
      %s94 = sphi 0, %s93
      %s108 = sphi 0, %s94
      %s112 = sphi 0, %s112
      %s114 = sphi 0, %s112
      %s115 = sphi 0, %s114
      %s129 = sphi 0, %s115
      %s135 = sphi 0, %s137
      %s138 = sphi 0, %s135
      %s139 = sphi 0, %s138
      %s155 = sphi 0, %s139
    $region4: #{tpu_custom_call.1} parent=1 // loop_header_branch
      %18 = sbr.rel (%p16) target = $region8
    $region5: #{tpu_custom_call.1} parent=1 // loop_body
      %s20 = ssub.s32 %s15, 1
      %s21 = ssub.s32 %s15, 2
      %s22 = sadd.s32 %s15, 1
      %s23 = ssub.s32 %s15, %s22
      %p24 = scmp.eq.s32.totalorder %s23, 0
      %s26 = sadd.s32 %s25, 1
      %s27 = scalar_select %p24, %s25, %s26
      %p30 = pneg %p24
      %p31 = scmp.eq.s32.totalorder %s15, 1
      %p32 = por %p30, %p31
      %p33 = scmp.ne.s32.totalorder %s25, %s28
      %p34 = scmp.eq.s32.totalorder %s15, 0
      %p35 = por %p33, %p34
      %p36 = scmp.ne.s32.totalorder %s25, %s28
      %p37 = scmp.eq.s32.totalorder %s20, 1
      %p38 = por %p36, %p37
      %p39 = scmp.ne.s32.totalorder %s28, %s29
      %p40 = scmp.eq.s32.totalorder %s20, 0
      %p41 = por %p39, %p40
      %p42 = scmp.ne.s32.totalorder %s28, %s29
      %p43 = scmp.eq.s32.totalorder %s21, 1
      %p44 = por %p42, %p43
      %p46 = scmp.ne.s32.totalorder %s29, %s45
      %p47 = scmp.eq.s32.totalorder %s21, 0
      %p48 = por %p46, %p47
      %s50 = sadd.s32 %s49, 1
      %p53 = scmp.eq.s32.totalorder %s15, 1
      %p54 = scmp.ne.s32.totalorder %s49, %s51
      %p55 = scmp.eq.s32.totalorder %s15, 0
      %p56 = por %p54, %p55
      %p57 = scmp.ne.s32.totalorder %s49, %s51
      %p58 = scmp.eq.s32.totalorder %s20, 1
      %p59 = por %p57, %p58
      %p60 = scmp.ne.s32.totalorder %s51, %s52
      %p61 = scmp.eq.s32.totalorder %s20, 0
      %p62 = por %p60, %p61
      %p63 = scmp.ne.s32.totalorder %s51, %s52
      %p64 = scmp.eq.s32.totalorder %s21, 1
      %p65 = por %p63, %p64
      %p67 = scmp.ne.s32.totalorder %s52, %s66
      %p68 = scmp.eq.s32.totalorder %s21, 0
      %p69 = por %p67, %p68
      %s71 = sadd.s32 %s70, 1
      %p74 = scmp.eq.s32.totalorder %s15, 1
      %p75 = scmp.ne.s32.totalorder %s70, %s72
      %p76 = scmp.eq.s32.totalorder %s15, 0
      %p77 = por %p75, %p76
      %p78 = scmp.ne.s32.totalorder %s70, %s72
      %p79 = scmp.eq.s32.totalorder %s20, 1
      %p80 = por %p78, %p79
      %p81 = scmp.ne.s32.totalorder %s72, %s73
      %p82 = scmp.eq.s32.totalorder %s20, 0
      %p83 = por %p81, %p82
      %p84 = scmp.ne.s32.totalorder %s72, %s73
      %p85 = scmp.eq.s32.totalorder %s21, 1
      %p86 = por %p84, %p85
      %p88 = scmp.ne.s32.totalorder %s73, %s87
      %p89 = scmp.eq.s32.totalorder %s21, 0
      %p90 = por %p88, %p89
      %s92 = sadd.s32 %s91, 1
      %p95 = scmp.eq.s32.totalorder %s15, 1
      %p96 = scmp.ne.s32.totalorder %s91, %s93
      %p97 = scmp.eq.s32.totalorder %s15, 0
      %p98 = por %p96, %p97
      %p99 = scmp.ne.s32.totalorder %s91, %s93
      %p100 = scmp.eq.s32.totalorder %s20, 1
      %p101 = por %p99, %p100
      %p102 = scmp.ne.s32.totalorder %s93, %s94
      %p103 = scmp.eq.s32.totalorder %s20, 0
      %p104 = por %p102, %p103
      %p105 = scmp.ne.s32.totalorder %s93, %s94
      %p106 = scmp.eq.s32.totalorder %s21, 1
      %p107 = por %p105, %p106
      %p109 = scmp.ne.s32.totalorder %s94, %s108
      %p110 = scmp.eq.s32.totalorder %s21, 0
      %p111 = por %p109, %p110
      %s113 = sadd.s32 %s112, 1
      %p116 = scmp.eq.s32.totalorder %s15, 1
      %p117 = scmp.ne.s32.totalorder %s112, %s114
      %p118 = scmp.eq.s32.totalorder %s15, 0
      %p119 = por %p117, %p118
      %p120 = scmp.ne.s32.totalorder %s112, %s114
      %p121 = scmp.eq.s32.totalorder %s20, 1
      %p122 = por %p120, %p121
      %p123 = scmp.ne.s32.totalorder %s114, %s115
      %p124 = scmp.eq.s32.totalorder %s20, 0
      %p125 = por %p123, %p124
      %p126 = scmp.ne.s32.totalorder %s114, %s115
      %p127 = scmp.eq.s32.totalorder %s21, 1
      %p128 = por %p126, %p127
      %p130 = scmp.ne.s32.totalorder %s115, %s129
      %p131 = scmp.eq.s32.totalorder %s21, 0
      %p132 = por %p130, %p131
      %s133 = ssub.s32 %s15, %s22
      %p134 = scmp.eq.s32.totalorder %s133, 0
      %s136 = sadd.s32 %s135, 1
      %s137 = scalar_select %p134, %s135, %s136
      %p140 = pneg %p134
      %p141 = scmp.eq.s32.totalorder %s15, 1
      %p142 = por %p140, %p141
      %p143 = scmp.ne.s32.totalorder %s135, %s138
      %p144 = scmp.eq.s32.totalorder %s15, 0
      %p145 = por %p143, %p144
      %p146 = scmp.ne.s32.totalorder %s135, %s138
      %p147 = scmp.eq.s32.totalorder %s20, 1
      %p148 = por %p146, %p147
      %p149 = scmp.ne.s32.totalorder %s138, %s139
      %p150 = scmp.eq.s32.totalorder %s20, 0
      %p151 = por %p149, %p150
      %p152 = scmp.ne.s32.totalorder %s138, %s139
      %p153 = scmp.eq.s32.totalorder %s21, 1
      %p154 = por %p152, %p153
      %p156 = scmp.ne.s32.totalorder %s139, %s155
      %p157 = scmp.eq.s32.totalorder %s21, 0
      %p158 = por %p156, %p157
      %p159 = scmp.le.s32.totalorder 1, %s15
      %p160 = scmp.lt.s32.totalorder %s15, 3
      %p161 = pnand %p159, %p160
      %p162 = pneg %p161
      // Predicated region
      $region9: #{tpu_custom_call.1} parent=5 // pred_check
        _
      $region10: #{tpu_custom_call.1} parent=5 // pred_check_branch
        %164 = sbr.rel (%p161) target = $region12
      $region11: #{tpu_custom_call.1} parent=5 // pred_region
        %s165 = ssub.s32 %s15, 1
        // Predicated region
        $region13: #{tpu_custom_call.1} parent=11 // pred_check
          %p166 = pneg %p62
        $region14: #{tpu_custom_call.1} parent=11 // pred_check_branch
          %168 = sbr.rel (%p166) target = $region16
        $region15: #{tpu_custom_call.1} parent=11 // pred_region
          _
        $region16: #{tpu_custom_call.1} parent=11 // pred_fallthru
          _
        // Predicated region
        $region17: #{tpu_custom_call.1} parent=11 // pred_check
          %p169 = pneg %p83
        $region18: #{tpu_custom_call.1} parent=11 // pred_check_branch
          %171 = sbr.rel (%p169) target = $region20
        $region19: #{tpu_custom_call.1} parent=11 // pred_region
          _
        $region20: #{tpu_custom_call.1} parent=11 // pred_fallthru
          _
        // Predicated region
        $region21: #{tpu_custom_call.1} parent=11 // pred_check
          %p172 = pneg %p104
        $region22: #{tpu_custom_call.1} parent=11 // pred_check_branch
          %174 = sbr.rel (%p172) target = $region24
        $region23: #{tpu_custom_call.1} parent=11 // pred_region
          %s176 = ssub.s32 1024, 1024
          %177 = vsyncadd [#allocation3], %s176
          %s178 = sshll.u32 [#allocation2], 4
          %s179 = int_to_ptr.vmem [resolvable:$true] %s178
          %184 = dma.hbm_to_vmem [thread:$0]  %s3, 1024, %s179, [#allocation3], 64, 64, 4
        $region24: #{tpu_custom_call.1} parent=11 // pred_fallthru
          _
        // Predicated region
        $region25: #{tpu_custom_call.1} parent=11 // pred_check
          %p185 = pneg %p125
        $region26: #{tpu_custom_call.1} parent=11 // pred_check_branch
          %187 = sbr.rel (%p185) target = $region28
        $region27: #{tpu_custom_call.1} parent=11 // pred_region
          _
        $region28: #{tpu_custom_call.1} parent=11 // pred_fallthru
          _
      $region12: #{tpu_custom_call.1} parent=5 // pred_fallthru
        _
      %p188 = scmp.lt.s32.totalorder %s15, 2
      // Predicated region
      $region29: #{tpu_custom_call.1} parent=5 // pred_check
        %p189 = pneg %p188
      $region30: #{tpu_custom_call.1} parent=5 // pred_check_branch
        %191 = sbr.rel (%p189) target = $region32
      $region31: #{tpu_custom_call.1} parent=5 // pred_region
        // Predicated region
        $region33: #{tpu_custom_call.1} parent=31 // pred_check
          %p192 = pneg %p35
        $region34: #{tpu_custom_call.1} parent=31 // pred_check_branch
          %194 = sbr.rel (%p192) target = $region36
        $region35: #{tpu_custom_call.1} parent=31 // pred_region
          %s195 = smul.u32 2, %s15
          %p196 = scmp.lt.s32.totalorder %s195, 3
          %s197 = scalar_select %p196, %s195, 3
          %s198 = smul.addr %s197, 8
          %s199 = scalar_lea.vmem %s0, %s198
          %s200 = smul.u32 2, %s15
        $region36: #{tpu_custom_call.1} parent=31 // pred_fallthru
          _
      $region32: #{tpu_custom_call.1} parent=5 // pred_fallthru
        _
      %p201 = scmp.le.s32.totalorder 1, %s15
      %p202 = scmp.lt.s32.totalorder %s15, 3
      %p203 = pnand %p201, %p202
      %p204 = pneg %p203
      // Predicated region
      $region37: #{tpu_custom_call.1} parent=5 // pred_check
        _
      $region38: #{tpu_custom_call.1} parent=5 // pred_check_branch
        %206 = sbr.rel (%p203) target = $region40
      $region39: #{tpu_custom_call.1} parent=5 // pred_region
        %s207 = ssub.s32 %s15, 1
        // Predicated region
        $region41: #{tpu_custom_call.1} parent=39 // pred_check
          %p208 = pneg %p104
        $region42: #{tpu_custom_call.1} parent=39 // pred_check_branch
          %210 = sbr.rel (%p208) target = $region44
        $region43: #{tpu_custom_call.1} parent=39 // pred_region
          %211 = dma.done [#allocation3], 1024
        $region44: #{tpu_custom_call.1} parent=39 // pred_fallthru
          _
        %s212 = smul.u32 2, %s20
        %p213 = scmp.lt.s32.totalorder %s212, 3
        %s214 = scalar_select %p213, %s212, 3
        %s215 = smul.addr %s214, 8
        %s216 = scalar_lea.vmem %s0, %s215
        %p217 = pneg %p41
        %p218 = pneg %p38
        %p219 = pneg %p62
        %p220 = pneg %p59
        %p221 = pneg %p83
        %p222 = pneg %p80
        %p223 = pneg %p104
        %p224 = pneg %p101
        %p225 = pneg %p125
        %p226 = pneg %p122
        %p227 = pneg %p151
        %p228 = pneg %p148
        %s229 = sand.u32 %s138, 1
        %s230 = scalar_lea.sflag [#allocation4], %s229
        %s231 = sand.u32 %s138, 1
        %s232 = smul.addr %s231, 16
        %s233 = scalar_lea.vmem [#allocation5], %s232
        %s234 = smul.u32 2, %s20
        %p235 = scmp.lt.s32.totalorder %s234, 3
        %s236 = scalar_select %p235, %s234, 3
        %s237 = smul.addr %s236, 8
        %s238 = scalar_lea.vmem %s0, %s237
        %s239 = smul.u32 2, %s20
        %s240 = smul.u32 2, %s20
        %v242 = vld [vmem:[%s238] sm:$0xff]
        %v243 = vld [vmem:[%s238 + $0x8] sm:$0xff]
        %v244 = vpack.c.bf16 %v243, %v242
        %v245 = vld [vmem:[%s1] sm:$0xff]
        %v246 = vld [vmem:[%s1 + $0x8] sm:$0xff]
        %v247 = vld [vmem:[%s2] sm:$0x3]
        %v249 = vlaneseq
        %v250 = vshrl.u32 %v249, 7
        %v251 = vsub.s32 0, %v250
        %v252 = vrot.slane %v247, %v251
        %v253 = vlaneseq
        %v254 = vshrl.u32 %v253, 7
        %v255 = vsub.s32 1, %v254
        %v256 = vrot.slane %v247, %v255
        %v261 = vunpack.c.l.b16 %v245
        %v262 = vunpack.c.h.b16 %v245
        %v263 = vunpack.c.l.b16 %v246
        %v264 = vunpack.c.h.b16 %v246
        %v265 = vpack.c.b16 %v263, %v261
        %v266 = vpack.c.b16 %v264, %v262
        %vm269 = vcmask 130048
        %v271 = vsel %vm269, %v244, 0
        %273 = vmatprep.subr.bf16.mxu0 0
        %274 = vmatpush1.bf16.msra.mxu0 0
        %275 = vmatprep.subr.bf16.mxu0 0
        %276 = vmatpush1.bf16.msra.mxu0 0
        %277 = vmatprep.subr.bf16.mxu0 0
        %278 = vmatpush1.bf16.msra.mxu0 0
        %279 = vmatprep.subr.bf16.mxu0 0
        %280 = vmatpush1.bf16.msra.mxu0 0
        %281 = vmatprep.subr.bf16.mxu0 0
        %282 = vmatpush1.bf16.msra.mxu0 0
        %283 = vmatprep.subr.bf16.mxu0 0
        %284 = vmatpush1.bf16.msra.mxu0 0
        %285 = vmatprep.subr.bf16.mxu0 0
        %286 = vmatpush1.bf16.msra.mxu0 0
        %287 = vmatprep.subr.bf16.mxu0 %v266
        %288 = vmatpush1.bf16.msra.mxu0 %v265
        %289 = vmatprep.subr.bf16.mxu0 0
        %290 = vmatpush2.bf16.msra.mxu0 0
        %291 = vmatprep.subr.bf16.mxu0 0
        %292 = vmatpush2.bf16.msra.mxu0 0
        %293 = vmatprep.subr.bf16.mxu0 0
        %294 = vmatpush2.bf16.msra.mxu0 0
        %295 = vmatprep.subr.bf16.mxu0 0
        %296 = vmatpush2.bf16.msra.mxu0 0
        %297 = vmatprep.subr.bf16.mxu0 0
        %298 = vmatpush2.bf16.msra.mxu0 0
        %299 = vmatprep.subr.bf16.mxu0 0
        %300 = vmatpush2.bf16.msra.mxu0 0
        %301 = vmatprep.subr.bf16.mxu0 0
        %302 = vmatpush2.bf16.msra.mxu0 0
        %303 = vmatprep.subr.bf16.mxu0 0
        %304 = vmatpush2.bf16.msra.mxu0 0
        %305 = vmatprep.mubr.bf16.mxu0 0
        %306 = vmatmul.mubr.bf16.gmra.mxu0 %v271
        %v307 = vpop.f32.mrf.mxu0
        %v308 = vadd.f32 %v252, %v307
        %v309 = vpop.f32.mrf.mxu0
        %v310 = vadd.f32 %v256, %v309
        %v311 = vpop.f32.mrf.mxu0
        %v312 = vadd.f32 %v252, %v311
        %v313 = vpop.f32.mrf.mxu0
        %v314 = vadd.f32 %v256, %v313
        %315 = vdwg.mxu0
        %v316 = vtanh.pop %v310
        %v317 = vtanh.pop %v314
        %v318 = vpack.c.bf16 %v317, %v316
        %v319 = vld [vmem:[#allocation2] sm:$0xf]
        %v320 = vld [vmem:[#allocation2 + $0x4] sm:$0xf]
        %v321 = vld [vmem:[#allocation2 + $0x8] sm:$0xf]
        %v322 = vld [vmem:[#allocation2 + $0xc] sm:$0xf]
        %v323 = vld [vmem:[#allocation2 + $0x10] sm:$0xf]
        %v324 = vld [vmem:[#allocation2 + $0x14] sm:$0xf]
        %v325 = vld [vmem:[#allocation2 + $0x18] sm:$0xf]
        %v326 = vld [vmem:[#allocation2 + $0x1c] sm:$0xf]
        %v327 = vld [vmem:[#allocation2 + $0x20] sm:$0xf]
        %v328 = vld [vmem:[#allocation2 + $0x24] sm:$0xf]
        %v329 = vld [vmem:[#allocation2 + $0x28] sm:$0xf]
        %v330 = vld [vmem:[#allocation2 + $0x2c] sm:$0xf]
        %v331 = vld [vmem:[#allocation2 + $0x30] sm:$0xf]
        %v332 = vld [vmem:[#allocation2 + $0x34] sm:$0xf]
        %v333 = vld [vmem:[#allocation2 + $0x38] sm:$0xf]
        %v334 = vld [vmem:[#allocation2 + $0x3c] sm:$0xf]
        %v335 = vld [vmem:[%s4] sm:$0x1]
        %v337 = vlaneseq
        %v338 = vshrl.u32 %v337, 7
        %v339 = vsub.s32 0, %v338
        %v340 = vrot.slane %v335, %v339
        %v358 = vunpack.c.l.b16 %v319
        %v359 = vunpack.c.l.b16 %v320
        %v360 = vunpack.c.l.b16 %v321
        %v361 = vunpack.c.l.b16 %v322
        %v362 = vunpack.c.l.b16 %v323
        %v363 = vunpack.c.l.b16 %v324
        %v364 = vunpack.c.l.b16 %v325
        %v365 = vunpack.c.l.b16 %v326
        %v366 = vunpack.c.l.b16 %v327
        %v367 = vunpack.c.l.b16 %v328
        %v368 = vunpack.c.l.b16 %v329
        %v369 = vunpack.c.l.b16 %v330
        %v370 = vunpack.c.l.b16 %v331
        %v371 = vunpack.c.l.b16 %v332
        %v372 = vunpack.c.l.b16 %v333
        %v373 = vunpack.c.l.b16 %v334
        %v374 = vpack.c.b16 %v359, %v358
        %v375 = vpack.c.b16 %v361, %v360
        %v376 = vpack.c.b16 %v363, %v362
        %v377 = vpack.c.b16 %v365, %v364
        %v378 = vpack.c.b16 %v367, %v366
        %v379 = vpack.c.b16 %v369, %v368
        %v380 = vpack.c.b16 %v371, %v370
        %v381 = vpack.c.b16 %v373, %v372
        %390 = vmatprep.subr.bf16.mxu0 0
        %391 = vmatpush1.bf16.msra.mxu0 %v381
        %392 = vmatprep.subr.bf16.mxu0 0
        %393 = vmatpush1.bf16.msra.mxu0 %v380
        %394 = vmatprep.subr.bf16.mxu0 0
        %395 = vmatpush1.bf16.msra.mxu0 %v379
        %396 = vmatprep.subr.bf16.mxu0 0
        %397 = vmatpush1.bf16.msra.mxu0 %v378
        %398 = vmatprep.subr.bf16.mxu0 0
        %399 = vmatpush1.bf16.msra.mxu0 %v377
        %400 = vmatprep.subr.bf16.mxu0 0
        %401 = vmatpush1.bf16.msra.mxu0 %v376
        %402 = vmatprep.subr.bf16.mxu0 0
        %403 = vmatpush1.bf16.msra.mxu0 %v375
        %404 = vmatprep.subr.bf16.mxu0 0
        %405 = vmatpush1.bf16.msra.mxu0 %v374
        %406 = vmatprep.subr.bf16.mxu0 0
        %407 = vmatpush2.bf16.msra.mxu0 0
        %408 = vmatprep.subr.bf16.mxu0 0
        %409 = vmatpush2.bf16.msra.mxu0 0
        %410 = vmatprep.subr.bf16.mxu0 0
        %411 = vmatpush2.bf16.msra.mxu0 0
        %412 = vmatprep.subr.bf16.mxu0 0
        %413 = vmatpush2.bf16.msra.mxu0 0
        %414 = vmatprep.subr.bf16.mxu0 0
        %415 = vmatpush2.bf16.msra.mxu0 0
        %416 = vmatprep.subr.bf16.mxu0 0
        %417 = vmatpush2.bf16.msra.mxu0 0
        %418 = vmatprep.subr.bf16.mxu0 0
        %419 = vmatpush2.bf16.msra.mxu0 0
        %420 = vmatprep.subr.bf16.mxu0 0
        %421 = vmatpush2.bf16.msra.mxu0 0
        %422 = vmatprep.mubr.bf16.mxu0 0
        %423 = vmatmul.mubr.bf16.gmra.mxu0 %v318
        %v424 = vpop.f32.mrf.mxu0
        %v425 = vadd.f32 %v340, %v424
        %v426 = vpop.f32.mrf.mxu0
        %v427 = vpop.f32.mrf.mxu0
        %v428 = vadd.f32 %v340, %v427
        %v429 = vpop.f32.mrf.mxu0
        %430 = vdwg.mxu0
        %v431 = vadd.f32 %v425, %v308
        %v432 = vadd.f32 %v428, %v312
        %v433 = vtanh.pop %v431
        %v434 = vtanh.pop %v432
        %435 = vst [vmem:[%s233] sm:$0xff] %v433
        %436 = vst [vmem:[%s233 + $0x8] sm:$0xff] %v434
        %s437 = sand.u32 %s138, 1
        %s438 = scalar_lea.sflag [#allocation4], %s437
        %s439 = sand.u32 %s138, 1
        %s440 = smul.addr %s439, 16
        %s441 = scalar_lea.vmem [#allocation5], %s440
        // Predicated region
        $region45: #{tpu_custom_call.1} parent=39 // pred_check
          %p442 = pneg %p148
        $region46: #{tpu_custom_call.1} parent=39 // pred_check_branch
          %444 = sbr.rel (%p442) target = $region48
        $region47: #{tpu_custom_call.1} parent=39 // pred_region
          %s445 = smul.u32 2, %s20
          %s447 = ssub.s32 256, 256
          %448 = vsyncadd %s438, %s447
          %s449 = smul.addr %s445, 128
          %s450 = scalar_lea.hbm %s5, %s449
          %s451 = sshll.u32 %s441, 4
          %s452 = int_to_ptr.vmem [resolvable:$true] %s451
          %457 = dma.vmem_to_hbm [thread:$0]  %s452, 256, %s450, %s438, 128, 128, 8
        $region48: #{tpu_custom_call.1} parent=39 // pred_fallthru
          _
      $region40: #{tpu_custom_call.1} parent=5 // pred_fallthru
        _
      %p458 = scmp.le.s32.totalorder 2, %s15
      // Predicated region
      $region49: #{tpu_custom_call.1} parent=5 // pred_check
        %p459 = pneg %p458
      $region50: #{tpu_custom_call.1} parent=5 // pred_check_branch
        %461 = sbr.rel (%p459) target = $region52
      $region51: #{tpu_custom_call.1} parent=5 // pred_region
        %s462 = ssub.s32 %s15, 2
        // Predicated region
        $region53: #{tpu_custom_call.1} parent=51 // pred_check
          %p463 = pneg %p154
        $region54: #{tpu_custom_call.1} parent=51 // pred_check_branch
          %465 = sbr.rel (%p463) target = $region56
        $region55: #{tpu_custom_call.1} parent=51 // pred_region
          %s466 = sand.u32 %s139, 1
          %s467 = scalar_lea.sflag [#allocation4], %s466
          %s468 = sand.u32 %s139, 1
          %s469 = smul.addr %s468, 16
          %s470 = scalar_lea.vmem [#allocation5], %s469
          %471 = dma.done %s467, 256
        $region56: #{tpu_custom_call.1} parent=51 // pred_fallthru
          _
      $region52: #{tpu_custom_call.1} parent=5 // pred_fallthru
        _
    $region6: #{tpu_custom_call.1} parent=1 // loop_footer
      %s19 = sadd.s32 1, %s15
    $region7: #{tpu_custom_call.1} parent=1 // loop_footer_branch
      %14 = sbr.rel target = $region3
    $region8: #{tpu_custom_call.1} parent=1 // loop_exit
      _
    %472 = vsyncpa [#allocation3], 1
    %s473 = scalar_lea.sflag [#allocation3], 1
    %474 = vsyncpa %s473, 1
    %475 = vsyncpa [#allocation4], 1
    %s476 = scalar_lea.sflag [#allocation4], 1
    %477 = vsyncpa %s476, 1

// kernel: tpu_custom_call.1
$region0: #{tpu_custom_call.1}
  #allocation0 [shape = 'u32[]', space=smem, size = 0x4, offset = 0x4, fixed_abs, tag = 'smem constant byte address 0x4 - core index']
  #allocation1 [shape = 'u32[144,128]{1,0:T(1,128)}', space=vmem, size = 0x12000, scoped, tag = 'internal scratch']
  %s0 = inlined_call_operand.vmem [shape: f32[32,16], index: 0, kind: input, shape index: {}]
  %s1 = inlined_call_operand.vmem [shape: bf16[16,256], index: 1, kind: input, shape index: {}]
  %s2 = inlined_call_operand.vmem [shape: f32[1,256], index: 2, kind: input, shape index: {}]
  %s3 = inlined_call_operand.hbm [shape: bf16[128,128], index: 3, kind: input, shape index: {}]
  %s4 = inlined_call_operand.vmem [shape: f32[1,128], index: 4, kind: input, shape index: {}]
  %s5 = inlined_call_operand.hbm [shape: f32[32,128], index: 5, kind: output, shape index: {}]
  %s6 = sld [smem:[#allocation0]]
  $region57: #{tpu_custom_call.1} parent=0
    _
  %s8 = ssub.s32 1, %s6
  %s9 = scalar_select 0, %s8, %s6
  $region1: #{tpu_custom_call.1} parent=0
    #allocation2 [shape = 'u8[32768]{0}', space=vmem, size = 0x8000, scoped, tag = 'input window, operand 3, single buffered']
    #allocation3 [shape = 's32[2]{0}', space=sflag, size = 0x8, scoped, tag = 'scoped memory for tpu_custom_call.1']
    #allocation4 [shape = 's32[2]{0}', space=sflag, size = 0x8, scoped, tag = 'scoped memory for tpu_custom_call.1']
    #allocation5 [shape = 'u8[16384]{0}', space=vmem, size = 0x4000, scoped, tag = 'output window, operand 0']
    %10 = vsyncpa [#allocation3], 0
    %11 = vsyncpa [#allocation4], 0
    %s12 = scalar_lea.sflag [#allocation4], 1
    %13 = vsyncpa %s12, 0
    loop: start=0, step=1, limit=4
    $region2: #{tpu_custom_call.1} parent=1 // loop_pre_header
      _
    $region3: #{tpu_custom_call.1} parent=1 // loop_header
      %s15 = sphi 0, %s19
      %p16 = scmp.ge.s32.totalorder %s15, 4
      %s25 = sphi 0, %s27
      %s28 = sphi 0, %s25
      %s29 = sphi 0, %s28
      %s45 = sphi 0, %s29
      %s49 = sphi 0, %s49
      %s51 = sphi 0, %s49
      %s52 = sphi 0, %s51
      %s66 = sphi 0, %s52
      %s70 = sphi 0, %s70
      %s72 = sphi 0, %s70
      %s73 = sphi 0, %s72
      %s87 = sphi 0, %s73
      %s91 = sphi 0, %s91
      %s93 = sphi 0, %s91
      %s94 = sphi 0, %s93
      %s108 = sphi 0, %s94
      %s112 = sphi 0, %s112
      %s114 = sphi 0, %s112
      %s115 = sphi 0, %s114
      %s129 = sphi 0, %s115
      %s135 = sphi 0, %s137
      %s138 = sphi 0, %s135
      %s139 = sphi 0, %s138
      %s155 = sphi 0, %s139
    $region4: #{tpu_custom_call.1} parent=1 // loop_header_branch
      %18 = sbr.rel (%p16) target = $region8
    $region5: #{tpu_custom_call.1} parent=1 // loop_body
      %s20 = ssub.s32 %s15, 1
      %s21 = ssub.s32 %s15, 2
      %s22 = sadd.s32 %s15, 1
      %s23 = ssub.s32 %s15, %s22
      %p24 = scmp.eq.s32.totalorder %s23, 0
      %s26 = sadd.s32 %s25, 1
      %s27 = scalar_select %p24, %s25, %s26
      %p30 = pneg %p24
      %p31 = scmp.eq.s32.totalorder %s15, 1
      %p32 = por %p30, %p31
      %p33 = scmp.ne.s32.totalorder %s25, %s28
      %p34 = scmp.eq.s32.totalorder %s15, 0
      %p35 = por %p33, %p34
      %p36 = scmp.ne.s32.totalorder %s25, %s28
      %p37 = scmp.eq.s32.totalorder %s20, 1
      %p38 = por %p36, %p37
      %p39 = scmp.ne.s32.totalorder %s28, %s29
      %p40 = scmp.eq.s32.totalorder %s20, 0
      %p41 = por %p39, %p40
      %p42 = scmp.ne.s32.totalorder %s28, %s29
      %p43 = scmp.eq.s32.totalorder %s21, 1
      %p44 = por %p42, %p43
      %p46 = scmp.ne.s32.totalorder %s29, %s45
      %p47 = scmp.eq.s32.totalorder %s21, 0
      %p48 = por %p46, %p47
      %s50 = sadd.s32 %s49, 1
      %p53 = scmp.eq.s32.totalorder %s15, 1
      %p54 = scmp.ne.s32.totalorder %s49, %s51
      %p55 = scmp.eq.s32.totalorder %s15, 0
      %p56 = por %p54, %p55
      %p57 = scmp.ne.s32.totalorder %s49, %s51
      %p58 = scmp.eq.s32.totalorder %s20, 1
      %p59 = por %p57, %p58
      %p60 = scmp.ne.s32.totalorder %s51, %s52
      %p61 = scmp.eq.s32.totalorder %s20, 0
      %p62 = por %p60, %p61
      %p63 = scmp.ne.s32.totalorder %s51, %s52
      %p64 = scmp.eq.s32.totalorder %s21, 1
      %p65 = por %p63, %p64
      %p67 = scmp.ne.s32.totalorder %s52, %s66
      %p68 = scmp.eq.s32.totalorder %s21, 0
      %p69 = por %p67, %p68
      %s71 = sadd.s32 %s70, 1
      %p74 = scmp.eq.s32.totalorder %s15, 1
      %p75 = scmp.ne.s32.totalorder %s70, %s72
      %p76 = scmp.eq.s32.totalorder %s15, 0
      %p77 = por %p75, %p76
      %p78 = scmp.ne.s32.totalorder %s70, %s72
      %p79 = scmp.eq.s32.totalorder %s20, 1
      %p80 = por %p78, %p79
      %p81 = scmp.ne.s32.totalorder %s72, %s73
      %p82 = scmp.eq.s32.totalorder %s20, 0
      %p83 = por %p81, %p82
      %p84 = scmp.ne.s32.totalorder %s72, %s73
      %p85 = scmp.eq.s32.totalorder %s21, 1
      %p86 = por %p84, %p85
      %p88 = scmp.ne.s32.totalorder %s73, %s87
      %p89 = scmp.eq.s32.totalorder %s21, 0
      %p90 = por %p88, %p89
      %s92 = sadd.s32 %s91, 1
      %p95 = scmp.eq.s32.totalorder %s15, 1
      %p96 = scmp.ne.s32.totalorder %s91, %s93
      %p97 = scmp.eq.s32.totalorder %s15, 0
      %p98 = por %p96, %p97
      %p99 = scmp.ne.s32.totalorder %s91, %s93
      %p100 = scmp.eq.s32.totalorder %s20, 1
      %p101 = por %p99, %p100
      %p102 = scmp.ne.s32.totalorder %s93, %s94
      %p103 = scmp.eq.s32.totalorder %s20, 0
      %p104 = por %p102, %p103
      %p105 = scmp.ne.s32.totalorder %s93, %s94
      %p106 = scmp.eq.s32.totalorder %s21, 1
      %p107 = por %p105, %p106
      %p109 = scmp.ne.s32.totalorder %s94, %s108
      %p110 = scmp.eq.s32.totalorder %s21, 0
      %p111 = por %p109, %p110
      %s113 = sadd.s32 %s112, 1
      %p116 = scmp.eq.s32.totalorder %s15, 1
      %p117 = scmp.ne.s32.totalorder %s112, %s114
      %p118 = scmp.eq.s32.totalorder %s15, 0
      %p119 = por %p117, %p118
      %p120 = scmp.ne.s32.totalorder %s112, %s114
      %p121 = scmp.eq.s32.totalorder %s20, 1
      %p122 = por %p120, %p121
      %p123 = scmp.ne.s32.totalorder %s114, %s115
      %p124 = scmp.eq.s32.totalorder %s20, 0
      %p125 = por %p123, %p124
      %p126 = scmp.ne.s32.totalorder %s114, %s115
      %p127 = scmp.eq.s32.totalorder %s21, 1
      %p128 = por %p126, %p127
      %p130 = scmp.ne.s32.totalorder %s115, %s129
      %p131 = scmp.eq.s32.totalorder %s21, 0
      %p132 = por %p130, %p131
      %s133 = ssub.s32 %s15, %s22
      %p134 = scmp.eq.s32.totalorder %s133, 0
      %s136 = sadd.s32 %s135, 1
      %s137 = scalar_select %p134, %s135, %s136
      %p140 = pneg %p134
      %p141 = scmp.eq.s32.totalorder %s15, 1
      %p142 = por %p140, %p141
      %p143 = scmp.ne.s32.totalorder %s135, %s138
      %p144 = scmp.eq.s32.totalorder %s15, 0
      %p145 = por %p143, %p144
      %p146 = scmp.ne.s32.totalorder %s135, %s138
      %p147 = scmp.eq.s32.totalorder %s20, 1
      %p148 = por %p146, %p147
      %p149 = scmp.ne.s32.totalorder %s138, %s139
      %p150 = scmp.eq.s32.totalorder %s20, 0
      %p151 = por %p149, %p150
      %p152 = scmp.ne.s32.totalorder %s138, %s139
      %p153 = scmp.eq.s32.totalorder %s21, 1
      %p154 = por %p152, %p153
      %p156 = scmp.ne.s32.totalorder %s139, %s155
      %p157 = scmp.eq.s32.totalorder %s21, 0
      %p158 = por %p156, %p157
      %p159 = scmp.le.s32.totalorder 1, %s15
      %p160 = scmp.lt.s32.totalorder %s15, 3
      %p161 = pnand %p159, %p160
      %p162 = pneg %p161
      // Predicated region
      $region9: #{tpu_custom_call.1} parent=5 // pred_check
        _
      $region10: #{tpu_custom_call.1} parent=5 // pred_check_branch
        %164 = sbr.rel (%p161) target = $region12
      $region11: #{tpu_custom_call.1} parent=5 // pred_region
        %s165 = ssub.s32 %s15, 1
        // Predicated region
        $region13: #{tpu_custom_call.1} parent=11 // pred_check
          %p166 = pneg %p62
        $region14: #{tpu_custom_call.1} parent=11 // pred_check_branch
          %168 = sbr.rel (%p166) target = $region16
        $region15: #{tpu_custom_call.1} parent=11 // pred_region
          _
        $region16: #{tpu_custom_call.1} parent=11 // pred_fallthru
          _
        // Predicated region
        $region17: #{tpu_custom_call.1} parent=11 // pred_check
          %p169 = pneg %p83
        $region18: #{tpu_custom_call.1} parent=11 // pred_check_branch
          %171 = sbr.rel (%p169) target = $region20
        $region19: #{tpu_custom_call.1} parent=11 // pred_region
          _
        $region20: #{tpu_custom_call.1} parent=11 // pred_fallthru
          _
        // Predicated region
        $region21: #{tpu_custom_call.1} parent=11 // pred_check
          %p172 = pneg %p104
        $region22: #{tpu_custom_call.1} parent=11 // pred_check_branch
          %174 = sbr.rel (%p172) target = $region24
        $region23: #{tpu_custom_call.1} parent=11 // pred_region
          %s176 = ssub.s32 1024, 1024
          %177 = vsyncadd [#allocation3], %s176
          %s178 = sshll.u32 [#allocation2], 4
          %s179 = int_to_ptr.vmem [resolvable:$true] %s178
          %184 = dma.hbm_to_vmem [thread:$0]  %s3, 1024, %s179, [#allocation3], 64, 64, 4
        $region24: #{tpu_custom_call.1} parent=11 // pred_fallthru
          _
        // Predicated region
        $region25: #{tpu_custom_call.1} parent=11 // pred_check
          %p185 = pneg %p125
        $region26: #{tpu_custom_call.1} parent=11 // pred_check_branch
          %187 = sbr.rel (%p185) target = $region28
        $region27: #{tpu_custom_call.1} parent=11 // pred_region
          _
        $region28: #{tpu_custom_call.1} parent=11 // pred_fallthru
          _
      $region12: #{tpu_custom_call.1} parent=5 // pred_fallthru
        _
      %p188 = scmp.lt.s32.totalorder %s15, 2
      // Predicated region
      $region29: #{tpu_custom_call.1} parent=5 // pred_check
        %p189 = pneg %p188
      $region30: #{tpu_custom_call.1} parent=5 // pred_check_branch
        %191 = sbr.rel (%p189) target = $region32
      $region31: #{tpu_custom_call.1} parent=5 // pred_region
        // Predicated region
        $region33: #{tpu_custom_call.1} parent=31 // pred_check
          %p192 = pneg %p35
        $region34: #{tpu_custom_call.1} parent=31 // pred_check_branch
          %194 = sbr.rel (%p192) target = $region36
        $region35: #{tpu_custom_call.1} parent=31 // pred_region
          %s195 = smul.u32 2, %s15
          %p196 = scmp.lt.s32.totalorder %s195, 3
          %s197 = scalar_select %p196, %s195, 3
          %s198 = smul.addr %s197, 8
          %s199 = scalar_lea.vmem %s0, %s198
          %s200 = smul.u32 2, %s15
        $region36: #{tpu_custom_call.1} parent=31 // pred_fallthru
          _
      $region32: #{tpu_custom_call.1} parent=5 // pred_fallthru
        _
      %p201 = scmp.le.s32.totalorder 1, %s15
      %p202 = scmp.lt.s32.totalorder %s15, 3
      %p203 = pnand %p201, %p202
      %p204 = pneg %p203
      // Predicated region
      $region37: #{tpu_custom_call.1} parent=5 // pred_check
        _
      $region38: #{tpu_custom_call.1} parent=5 // pred_check_branch
        %206 = sbr.rel (%p203) target = $region40
      $region39: #{tpu_custom_call.1} parent=5 // pred_region
        %s207 = ssub.s32 %s15, 1
        // Predicated region
        $region41: #{tpu_custom_call.1} parent=39 // pred_check
          %p208 = pneg %p104
        $region42: #{tpu_custom_call.1} parent=39 // pred_check_branch
          %210 = sbr.rel (%p208) target = $region44
        $region43: #{tpu_custom_call.1} parent=39 // pred_region
          %211 = dma.done [#allocation3], 1024
        $region44: #{tpu_custom_call.1} parent=39 // pred_fallthru
          _
        %s212 = smul.u32 2, %s20
        %p213 = scmp.lt.s32.totalorder %s212, 3
        %s214 = scalar_select %p213, %s212, 3
        %s215 = smul.addr %s214, 8
        %s216 = scalar_lea.vmem %s0, %s215
        %p217 = pneg %p41
        %p218 = pneg %p38
        %p219 = pneg %p62
        %p220 = pneg %p59
        %p221 = pneg %p83
        %p222 = pneg %p80
        %p223 = pneg %p104
        %p224 = pneg %p101
        %p225 = pneg %p125
        %p226 = pneg %p122
        %p227 = pneg %p151
        %p228 = pneg %p148
        %s229 = sand.u32 %s138, 1
        %s230 = scalar_lea.sflag [#allocation4], %s229
        %s231 = sand.u32 %s138, 1
        %s232 = smul.addr %s231, 16
        %s233 = scalar_lea.vmem [#allocation5], %s232
        %s234 = smul.u32 2, %s20
        %p235 = scmp.lt.s32.totalorder %s234, 3
        %s236 = scalar_select %p235, %s234, 3
        %s237 = smul.addr %s236, 8
        %s238 = scalar_lea.vmem %s0, %s237
        %s239 = smul.u32 2, %s20
        %s240 = smul.u32 2, %s20
        %v242 = vld [vmem:[%s238] sm:$0xff]
        %v243 = vld [vmem:[%s238 + $0x8] sm:$0xff]
        %v244 = vpack.c.bf16 %v243, %v242
        %v245 = vld [vmem:[%s1] sm:$0xff]
        %v246 = vld [vmem:[%s1 + $0x8] sm:$0xff]
        %v247 = vld [vmem:[%s2] sm:$0x3]
        %v249 = vlaneseq
        %v250 = vshrl.u32 %v249, 7
        %v251 = vsub.s32 0, %v250
        %v252 = vrot.slane %v247, %v251
        %v253 = vlaneseq
        %v254 = vshrl.u32 %v253, 7
        %v255 = vsub.s32 1, %v254
        %v256 = vrot.slane %v247, %v255
        %v261 = vunpack.c.l.b16 %v245
        %v262 = vunpack.c.h.b16 %v245
        %v263 = vunpack.c.l.b16 %v246
        %v264 = vunpack.c.h.b16 %v246
        %v265 = vpack.c.b16 %v263, %v261
        %v266 = vpack.c.b16 %v264, %v262
        %vm269 = vcmask 130048
        %v271 = vsel %vm269, %v244, 0
        %273 = vmatprep.subr.bf16.mxu0 0
        %274 = vmatpush1.bf16.msra.mxu0 0
        %275 = vmatprep.subr.bf16.mxu0 0
        %276 = vmatpush1.bf16.msra.mxu0 0
        %277 = vmatprep.subr.bf16.mxu0 0
        %278 = vmatpush1.bf16.msra.mxu0 0
        %279 = vmatprep.subr.bf16.mxu0 0
        %280 = vmatpush1.bf16.msra.mxu0 0
        %281 = vmatprep.subr.bf16.mxu0 0
        %282 = vmatpush1.bf16.msra.mxu0 0
        %283 = vmatprep.subr.bf16.mxu0 0
        %284 = vmatpush1.bf16.msra.mxu0 0
        %285 = vmatprep.subr.bf16.mxu0 0
        %286 = vmatpush1.bf16.msra.mxu0 0
        %287 = vmatprep.subr.bf16.mxu0 %v266
        %288 = vmatpush1.bf16.msra.mxu0 %v265
        %289 = vmatprep.subr.bf16.mxu0 0
        %290 = vmatpush2.bf16.msra.mxu0 0
        %291 = vmatprep.subr.bf16.mxu0 0
        %292 = vmatpush2.bf16.msra.mxu0 0
        %293 = vmatprep.subr.bf16.mxu0 0
        %294 = vmatpush2.bf16.msra.mxu0 0
        %295 = vmatprep.subr.bf16.mxu0 0
        %296 = vmatpush2.bf16.msra.mxu0 0
        %297 = vmatprep.subr.bf16.mxu0 0
        %298 = vmatpush2.bf16.msra.mxu0 0
        %299 = vmatprep.subr.bf16.mxu0 0
        %300 = vmatpush2.bf16.msra.mxu0 0
        %301 = vmatprep.subr.bf16.mxu0 0
        %302 = vmatpush2.bf16.msra.mxu0 0
        %303 = vmatprep.subr.bf16.mxu0 0
        %304 = vmatpush2.bf16.msra.mxu0 0
        %305 = vmatprep.mubr.bf16.mxu0 0
        %306 = vmatmul.mubr.bf16.gmra.mxu0 %v271
        %v307 = vpop.f32.mrf.mxu0
        %v308 = vadd.f32 %v252, %v307
        %v309 = vpop.f32.mrf.mxu0
        %v310 = vadd.f32 %v256, %v309
        %v311 = vpop.f32.mrf.mxu0
        %v312 = vadd.f32 %v252, %v311
        %v313 = vpop.f32.mrf.mxu0
        %v314 = vadd.f32 %v256, %v313
        %315 = vdwg.mxu0
        %v316 = vtanh.pop %v310
        %v317 = vtanh.pop %v314
        %v318 = vpack.c.bf16 %v317, %v316
        %v319 = vld [vmem:[#allocation2] sm:$0xf]
        %v320 = vld [vmem:[#allocation2 + $0x4] sm:$0xf]
        %v321 = vld [vmem:[#allocation2 + $0x8] sm:$0xf]
        %v322 = vld [vmem:[#allocation2 + $0xc] sm:$0xf]
        %v323 = vld [vmem:[#allocation2 + $0x10] sm:$0xf]
        %v324 = vld [vmem:[#allocation2 + $0x14] sm:$0xf]
        %v325 = vld [vmem:[#allocation2 + $0x18] sm:$0xf]
        %v326 = vld [vmem:[#allocation2 + $0x1c] sm:$0xf]
        %v327 = vld [vmem:[#allocation2 + $0x20] sm:$0xf]
        %v328 = vld [vmem:[#allocation2 + $0x24] sm:$0xf]
        %v329 = vld [vmem:[#allocation2 + $0x28] sm:$0xf]
        %v330 = vld [vmem:[#allocation2 + $0x2c] sm:$0xf]
        %v331 = vld [vmem:[#allocation2 + $0x30] sm:$0xf]
        %v332 = vld [vmem:[#allocation2 + $0x34] sm:$0xf]
        %v333 = vld [vmem:[#allocation2 + $0x38] sm:$0xf]
        %v334 = vld [vmem:[#allocation2 + $0x3c] sm:$0xf]
        %v335 = vld [vmem:[%s4] sm:$0x1]
        %v337 = vlaneseq
        %v338 = vshrl.u32 %v337, 7
        %v339 = vsub.s32 0, %v338
        %v340 = vrot.slane %v335, %v339
        %v358 = vunpack.c.l.b16 %v319
        %v359 = vunpack.c.l.b16 %v320
        %v360 = vunpack.c.l.b16 %v321
        %v361 = vunpack.c.l.b16 %v322
        %v362 = vunpack.c.l.b16 %v323
        %v363 = vunpack.c.l.b16 %v324
        %v364 = vunpack.c.l.b16 %v325
        %v365 = vunpack.c.l.b16 %v326
        %v366 = vunpack.c.l.b16 %v327
        %v367 = vunpack.c.l.b16 %v328
        %v368 = vunpack.c.l.b16 %v329
        %v369 = vunpack.c.l.b16 %v330
        %v370 = vunpack.c.l.b16 %v331
        %v371 = vunpack.c.l.b16 %v332
        %v372 = vunpack.c.l.b16 %v333
        %v373 = vunpack.c.l.b16 %v334
        %v374 = vpack.c.b16 %v359, %v358
        %v375 = vpack.c.b16 %v361, %v360
        %v376 = vpack.c.b16 %v363, %v362
        %v377 = vpack.c.b16 %v365, %v364
        %v378 = vpack.c.b16 %v367, %v366
        %v379 = vpack.c.b16 %v369, %v368
        %v380 = vpack.c.b16 %v371, %v370
        %v381 = vpack.c.b16 %v373, %v372
        %390 = vmatprep.subr.bf16.mxu0 0
        %391 = vmatpush1.bf16.msra.mxu0 %v381
        %392 = vmatprep.subr.bf16.mxu0 0
        %393 = vmatpush1.bf16.msra.mxu0 %v380
        %394 = vmatprep.subr.bf16.mxu0 0
        %395 = vmatpush1.bf16.msra.mxu0 %v379
        %396 = vmatprep.subr.bf16.mxu0 0
        %397 = vmatpush1.bf16.msra.mxu0 %v378
        %398 = vmatprep.subr.bf16.mxu0 0
        %399 = vmatpush1.bf16.msra.mxu0 %v377
        %400 = vmatprep.subr.bf16.mxu0 0
        %401 = vmatpush1.bf16.msra.mxu0 %v376
        %402 = vmatprep.subr.bf16.mxu0 0
        %403 = vmatpush1.bf16.msra.mxu0 %v375
        %404 = vmatprep.subr.bf16.mxu0 0
        %405 = vmatpush1.bf16.msra.mxu0 %v374
        %406 = vmatprep.subr.bf16.mxu0 0
        %407 = vmatpush2.bf16.msra.mxu0 0
        %408 = vmatprep.subr.bf16.mxu0 0
        %409 = vmatpush2.bf16.msra.mxu0 0
        %410 = vmatprep.subr.bf16.mxu0 0
        %411 = vmatpush2.bf16.msra.mxu0 0
        %412 = vmatprep.subr.bf16.mxu0 0
        %413 = vmatpush2.bf16.msra.mxu0 0
        %414 = vmatprep.subr.bf16.mxu0 0
        %415 = vmatpush2.bf16.msra.mxu0 0
        %416 = vmatprep.subr.bf16.mxu0 0
        %417 = vmatpush2.bf16.msra.mxu0 0
        %418 = vmatprep.subr.bf16.mxu0 0
        %419 = vmatpush2.bf16.msra.mxu0 0
        %420 = vmatprep.subr.bf16.mxu0 0
        %421 = vmatpush2.bf16.msra.mxu0 0
        %422 = vmatprep.mubr.bf16.mxu0 0
        %423 = vmatmul.mubr.bf16.gmra.mxu0 %v318
        %v424 = vpop.f32.mrf.mxu0
        %v425 = vadd.f32 %v340, %v424
        %v426 = vpop.f32.mrf.mxu0
        %v427 = vpop.f32.mrf.mxu0
        %v428 = vadd.f32 %v340, %v427
        %v429 = vpop.f32.mrf.mxu0
        %430 = vdwg.mxu0
        %v431 = vadd.f32 %v425, %v308
        %v432 = vadd.f32 %v428, %v312
        %v433 = vtanh.pop %v431
        %v434 = vtanh.pop %v432
        %435 = vst [vmem:[%s233] sm:$0xff] %v433
        %436 = vst [vmem:[%s233 + $0x8] sm:$0xff] %v434
        %s437 = sand.u32 %s138, 1
        %s438 = scalar_lea.sflag [#allocation4], %s437
        %s439 = sand.u32 %s138, 1
        %s440 = smul.addr %s439, 16
        %s441 = scalar_lea.vmem [#allocation5], %s440
        // Predicated region
        $region45: #{tpu_custom_call.1} parent=39 // pred_check
          %p442 = pneg %p148
        $region46: #{tpu_custom_call.1} parent=39 // pred_check_branch
          %444 = sbr.rel (%p442) target = $region48
        $region47: #{tpu_custom_call.1} parent=39 // pred_region
          %s445 = smul.u32 2, %s20
          %s447 = ssub.s32 256, 256
          %448 = vsyncadd %s438, %s447
          %s449 = smul.addr %s445, 128
          %s450 = scalar_lea.hbm %s5, %s449
          %s451 = sshll.u32 %s441, 4
          %s452 = int_to_ptr.vmem [resolvable:$true] %s451
          %457 = dma.vmem_to_hbm [thread:$0]  %s452, 256, %s450, %s438, 128, 128, 8
        $region48: #{tpu_custom_call.1} parent=39 // pred_fallthru
          _
      $region40: #{tpu_custom_call.1} parent=5 // pred_fallthru
        _
      %p458 = scmp.le.s32.totalorder 2, %s15
      // Predicated region
      $region49: #{tpu_custom_call.1} parent=5 // pred_check
        %p459 = pneg %p458
      $region50: #{tpu_custom_call.1} parent=5 // pred_check_branch
        %461 = sbr.rel (%p459) target = $region52
      $region51: #{tpu_custom_call.1} parent=5 // pred_region
        %s462 = ssub.s32 %s15, 2
        // Predicated region
        $region53: #{tpu_custom_call.1} parent=51 // pred_check
          %p463 = pneg %p154
        $region54: #{tpu_custom_call.1} parent=51 // pred_check_branch
          %465 = sbr.rel (%p463) target = $region56
        $region55: #{tpu_custom_call.1} parent=51 // pred_region
          %s466 = sand.u32 %s139, 1
          %s467 = scalar_lea.sflag [#allocation4], %s466
          %s468 = sand.u32 %s139, 1
          %s469 = smul.addr %s468, 16
          %s470 = scalar_lea.vmem [#allocation5], %s469
          %471 = dma.done %s467, 256
        $region56: #{tpu_custom_call.1} parent=51 // pred_fallthru
          _
      $region52: #{tpu_custom_call.1} parent=5 // pred_fallthru
        _
    $region6: #{tpu_custom_call.1} parent=1 // loop_footer
      %s19 = sadd.s32 1, %s15
    $region7: #{tpu_custom_call.1} parent=1 // loop_footer_branch
      %14 = sbr.rel target = $region3
    $region8: #{tpu_custom_call.1} parent=1 // loop_exit
      _
    %472 = vsyncpa [#allocation3], 1
    %s473 = scalar_lea.sflag [#allocation3], 1
    %474 = vsyncpa %s473, 1
    %475 = vsyncpa [#allocation4], 1
    %s476 = scalar_lea.sflag [#allocation4], 1
    %477 = vsyncpa %s476, 1

</llo_original>
